<compile_context>
chip_gen: v7x
topology: tpu7x:2x2x1
jax: 0.10.0
libtpu: 0.0.40
codegen_flags: <defaults>
</compile_context>

<pallas_src>
import functools

import jax
import jax.numpy as jnp
from jax.experimental import pallas as pl
from jax.experimental.pallas import tpu as pltpu


def _round_up(v, m):
    return (v + m - 1) // m * m


def gated_attn_kernel(x_ref, wab_ref, bab_ref, wc_ref, bc_ref, a_out_ref,
                      *, Dp, use_reduce):
    # x_ref:  (tm, Lp)     bf16
    # wab_ref:(Lp, 2*Dp)   bf16   (Wa | Wb fused along output columns)
    # bab_ref:(1, 2*Dp)    f32    (ba | bb fused)
    # wc_ref: (1, Dp) f32 if use_reduce else (Dp, n_tasks) f32
    # bc_ref: (1, n_tasks) f32
    # One fused MXU matmul for both hidden projections, f32 accumulation.
    pre = jnp.dot(x_ref[...], wab_ref[...],
                  preferred_element_type=jnp.float32)          # (tm, 2*Dp) f32
    pre = pre + bab_ref[...]                                   # single broadcast
    a = jnp.tanh(pre[:, :Dp])                                  # EUP
    b = jax.nn.sigmoid(pre[:, Dp:])                            # EUP
    gated = a * b                                              # (tm, Dp) f32, VPU

    if use_reduce:
        # n_tasks == 1: VPU multiply + XLU lane reduction; avoids a 1-column
        # MXU matmul that would use a single systolic-array output column.
        A = jnp.sum(gated * wc_ref[...], axis=-1, keepdims=True)   # (tm, 1)
    else:
        A = jnp.dot(gated, wc_ref[...],
                    preferred_element_type=jnp.float32)            # (tm, n_tasks)

    a_out_ref[...] = (A + bc_ref[...]).astype(a_out_ref.dtype)


def attn_net_gated(x, wa, ba, wb, bb, wc, bc, *, tm=256, vmem_limit_bytes=None):
    """x: (N, L); wa/wb: (L, D); ba/bb: (1, D); wc: (D, n_tasks); bc: (1, n_tasks).

    Returns (A, x) with A: (N, n_tasks) float32, matching the PyTorch module.
    """
    N, L = x.shape
    D = wa.shape[1]
    n_tasks = wc.shape[1]

    f32 = jnp.float32
    # Tile / padded dims: lane-align L and D to 128, rows to the tile size.
    tm = int(min(tm, _round_up(max(N, 1), 8)))
    Lp = _round_up(L, 128)
    Dp = _round_up(D, 128)
    Np = _round_up(N, tm)

    # Fuse Wa|Wb -> (Lp, 2*Dp), ba|bb -> (1, 2*Dp). Zero padding is exact:
    # padded pre-activation columns give tanh(0)*sigmoid(0) = 0 gated values,
    # and padded wc rows are zero, so padded columns/rows contribute nothing.
    wab = jnp.zeros((Lp, 2 * Dp), f32)
    wab = wab.at[:L, :D].set(wa.astype(f32)).at[:L, Dp:Dp + D].set(wb.astype(f32))
    bab = jnp.zeros((1, 2 * Dp), f32)
    bab = bab.at[:, :D].set(ba.astype(f32)).at[:, Dp:Dp + D].set(bb.astype(f32))
    wc_p = jnp.zeros((Dp, n_tasks), f32).at[:D, :].set(wc.astype(f32))
    bc_f = bc.astype(f32)

    xp = x.astype(f32)
    if Np != N or Lp != L:
        xp = jnp.zeros((Np, Lp), f32).at[:N, :L].set(xp)

    # bf16 for the big streaming operands; f32 accumulation inside the kernel.
    x_bf = xp.astype(jnp.bfloat16)
    wab_bf = wab.astype(jnp.bfloat16)

    use_reduce = (n_tasks == 1)
    if use_reduce:
        wc_in = wc_p.T                     # (1, Dp), lane-major over D
        wc_block = (1, Dp)
    else:
        wc_in = wc_p                       # (Dp, n_tasks)
        wc_block = (Dp, n_tasks)

    # Rough per-step VMEM budget; only set an explicit limit when the default
    # scoped VMEM (16/32 MiB depending on generation) would be too small.
    est_bytes = (
        2 * tm * Lp * 2                    # double-buffered bf16 x tile
        + 2 * Lp * (2 * Dp) * 2            # double-buffered bf16 fused weight
        + 2 * tm * n_tasks * 4             # double-buffered f32 output tile
        + 6 * tm * Dp * 4                  # f32 temporaries (pre / a / b / gated)
    )
    cp_kwargs = {"dimension_semantics": ("parallel",)}
    if vmem_limit_bytes is None and est_bytes > 16 * 1024 * 1024:
        vmem_limit_bytes = min(2 * est_bytes, 64 * 1024 * 1024)
    if vmem_limit_bytes is not None:
        cp_kwargs["vmem_limit_bytes"] = int(vmem_limit_bytes)

    kernel = functools.partial(gated_attn_kernel, Dp=Dp, use_reduce=use_reduce)

    A_pad = pl.pallas_call(
        kernel,
        out_shape=jax.ShapeDtypeStruct((Np, n_tasks), jnp.float32),
        grid_spec=pltpu.PrefetchScalarGridSpec(
            num_scalar_prefetch=0,
            grid=(Np // tm,),
            in_specs=[
                pl.BlockSpec((tm, Lp), lambda i: (i, 0)),          # x tile (bf16)
                pl.BlockSpec((Lp, 2 * Dp), lambda i: (0, 0)),      # Wa|Wb (bf16)
                pl.BlockSpec((1, 2 * Dp), lambda i: (0, 0)),       # ba|bb (f32)
                pl.BlockSpec(wc_block, lambda i: (0, 0)),          # Wc (f32)
                pl.BlockSpec((1, n_tasks), lambda i: (0, 0)),      # bc (f32)
            ],
            out_specs=pl.BlockSpec((tm, n_tasks), lambda i: (i, 0)),
        ),
        compiler_params=pltpu.CompilerParams(**cp_kwargs),
    )(x_bf, wab_bf, bab, wc_in, bc_f)

    A = A_pad[:N]
    # forward returns (A, x); x passes through untouched.
    return A, x


def reference_bf16(x, wa, ba, wb, bb, wc, bc):
    """Reference with the same bf16-input / f32-accumulate matmul recipe."""
    xb = x.astype(jnp.bfloat16)
    a = jnp.tanh(jnp.dot(xb, wa.astype(jnp.bfloat16),
                         preferred_element_type=jnp.float32) + ba)
    b = jax.nn.sigmoid(jnp.dot(xb, wb.astype(jnp.bfloat16),
                               preferred_element_type=jnp.float32) + bb)
    A = (a * b) @ wc + bc
    return A, x


def reference_f32(x, wa, ba, wb, bb, wc, bc):
    a = jnp.tanh(x @ wa + ba)
    b = jax.nn.sigmoid(x @ wb + bb)
    A = (a * b) @ wc + bc
    return A, x


if __name__ == "__main__":
    # Small shapes consistent with the module (module defaults L=1536, D=256,
    # n_tasks=1). N/L/D deliberately not lane/tile aligned to exercise padding.
    N, L, D, n_tasks = 500, 192, 96, 1

    key = jax.random.PRNGKey(0)
    kx, kwa, kba, kwb, kbb, kwc, kbc = jax.random.split(key, 7)

    x = jax.random.normal(kx, (N, L), dtype=jnp.float32)
    # Parameters stored pre-transposed ((L, D), (D, n_tasks)) for row-major matmul.
    wa = jax.random.normal(kwa, (L, D), dtype=jnp.float32) * 0.05
    ba = jax.random.normal(kba, (1, D), dtype=jnp.float32) * 0.05
    wb = jax.random.normal(kwb, (L, D), dtype=jnp.float32) * 0.05
    bb = jax.random.normal(kbb, (1, D), dtype=jnp.float32) * 0.05
    wc = jax.random.normal(kwc, (D, n_tasks), dtype=jnp.float32) * 0.05
    bc = jax.random.normal(kbc, (1, n_tasks), dtype=jnp.float32) * 0.05

    A, x_out = attn_net_gated(x, wa, ba, wb, bb, wc, bc)
    jax.block_until_ready((A, x_out))

    assert A.shape == (N, n_tasks)
    assert x_out.shape == (N, L)

    A_ref_bf, _ = reference_bf16(x, wa, ba, wb, bb, wc, bc)
    A_ref_f32, _ = reference_f32(x, wa, ba, wb, bb, wc, bc)
    assert jnp.allclose(A, A_ref_bf, atol=2e-3, rtol=2e-3), "mismatch vs bf16 reference"
    assert jnp.allclose(A, A_ref_f32, atol=5e-2, rtol=5e-2), "mismatch vs f32 reference"
    assert jnp.array_equal(x_out, x), "x passthrough mismatch"

    # TODO(synk): nn.Dropout(0.25) branch (dropout=True) not implemented; the
    # default module config (dropout=False) and inference path are covered.
    print("KERNEL_OK")
</pallas_src>

<mosaic_0001>
module attributes {stable_mosaic.version = 11 : i64} {
  func.func @gated_attn_kernel(%arg0: i32, %arg1: memref<256x256xbf16, #tpu.memory_space<vmem>>, %arg2: memref<256x256xbf16, #tpu.memory_space<vmem>>, %arg3: memref<1x256xf32, #tpu.memory_space<vmem>>, %arg4: memref<1x128xf32, #tpu.memory_space<vmem>>, %arg5: memref<1x1xf32, #tpu.memory_space<vmem>>, %arg6: memref<256x1xf32, #tpu.memory_space<vmem>>) attributes {dimension_semantics = [#tpu.dimension_semantics<parallel>], iteration_bounds = array<i64: 2>, scalar_prefetch = 0 : i64, scratch_operands = 0 : i64, tpu.core_type = #tpu.core_type<tc>, window_params = [{transform_indices = @transform_0, window_bounds = array<i64: 256, 256>}, {pipeline_mode = #tpu.pipeline_mode<synchronous>, transform_indices = @transform_1, window_bounds = array<i64: 256, 256>}, {pipeline_mode = #tpu.pipeline_mode<synchronous>, transform_indices = @transform_2, window_bounds = array<i64: 1, 256>}, {pipeline_mode = #tpu.pipeline_mode<synchronous>, transform_indices = @transform_3, window_bounds = array<i64: 1, 128>}, {pipeline_mode = #tpu.pipeline_mode<synchronous>, transform_indices = @transform_4, window_bounds = array<i64: 1, 1>}, {transform_indices = @transform_5, window_bounds = array<i64: 256, 1>}]} {
    %c0 = arith.constant 0 : index
    %c0_0 = arith.constant 0 : index
    %0 = vector.load %arg1[%c0, %c0_0] : memref<256x256xbf16, #tpu.memory_space<vmem>>, vector<256x256xbf16>
    %c0_1 = arith.constant 0 : index
    %c0_2 = arith.constant 0 : index
    %1 = vector.load %arg2[%c0_1, %c0_2] : memref<256x256xbf16, #tpu.memory_space<vmem>>, vector<256x256xbf16>
    %cst = arith.constant dense<0.000000e+00> : vector<256x256xf32>
    %2 = tpu.matmul %0, %1, %cst {dimension_numbers = #tpu.dot_dimension_numbers<[1], [0], [0], [1], [0, 0, 1, 1], [], []>} : vector<256x256xbf16>, vector<256x256xbf16>, vector<256x256xf32> -> vector<256x256xf32>
    %c0_3 = arith.constant 0 : index
    %c0_4 = arith.constant 0 : index
    %3 = vector.load %arg3[%c0_3, %c0_4] : memref<1x256xf32, #tpu.memory_space<vmem>>, vector<1x256xf32>
    %4 = vector.broadcast %3 : vector<1x256xf32> to vector<256x256xf32>
    %5 = arith.addf %2, %4 : vector<256x256xf32>
    %6 = vector.extract_strided_slice %5 {offsets = [0, 0], sizes = [256, 128], strides = [1, 1]} : vector<256x256xf32> to vector<256x128xf32>
    %7 = math.tanh %6 : vector<256x128xf32>
    %8 = vector.extract_strided_slice %5 {offsets = [0, 128], sizes = [256, 128], strides = [1, 1]} : vector<256x256xf32> to vector<256x128xf32>
    %9 = arith.negf %8 : vector<256x128xf32>
    %10 = math.exp %9 : vector<256x128xf32>
    %cst_5 = arith.constant 1.000000e+00 : f32
    %11 = vector.broadcast %cst_5 : f32 to vector<256x128xf32>
    %12 = arith.addf %11, %10 : vector<256x128xf32>
    %13 = arith.divf %11, %12 : vector<256x128xf32>
    %14 = arith.mulf %7, %13 : vector<256x128xf32>
    %c0_6 = arith.constant 0 : index
    %c0_7 = arith.constant 0 : index
    %15 = vector.load %arg4[%c0_6, %c0_7] : memref<1x128xf32, #tpu.memory_space<vmem>>, vector<1x128xf32>
    %16 = vector.broadcast %15 : vector<1x128xf32> to vector<256x128xf32>
    %17 = arith.mulf %14, %16 : vector<256x128xf32>
    %cst_8 = arith.constant dense<0.000000e+00> : vector<256xf32>
    %18 = vector.multi_reduction <add>, %17, %cst_8 [1] : vector<256x128xf32> to vector<256xf32>
    %19 = vector.shape_cast %18 : vector<256xf32> to vector<256x1xf32>
    %c0_9 = arith.constant 0 : index
    %c0_10 = arith.constant 0 : index
    %20 = vector.load %arg5[%c0_9, %c0_10] : memref<1x1xf32, #tpu.memory_space<vmem>>, vector<1x1xf32>
    %21 = vector.broadcast %20 : vector<1x1xf32> to vector<256x1xf32>
    %22 = arith.addf %19, %21 : vector<256x1xf32>
    %c0_11 = arith.constant 0 : index
    %c0_12 = arith.constant 0 : index
    %23 = vector.load %arg6[%c0_11, %c0_12] : memref<256x1xf32, #tpu.memory_space<vmem>>, vector<256x1xf32>
    tpu.vector_store %arg6[%c0_11, %c0_12], %22 {strides = array<i32>} : memref<256x1xf32, #tpu.memory_space<vmem>>, vector<256x1xf32>,
    return
  }
  func.func @transform_0(%arg0: i32) -> (i32, i32) {
    %c0_i32 = arith.constant 0 : i32
    %c0_i32_0 = arith.constant 0 : i32
    return %arg0, %c0_i32 : i32, i32
  }
  func.func @transform_1(%arg0: i32) -> (i32, i32) {
    %c0_i32 = arith.constant 0 : i32
    %c0_i32_0 = arith.constant 0 : i32
    %c0_i32_1 = arith.constant 0 : i32
    return %c0_i32, %c0_i32_0 : i32, i32
  }
  func.func @transform_2(%arg0: i32) -> (i32, i32) {
    %c0_i32 = arith.constant 0 : i32
    %c0_i32_0 = arith.constant 0 : i32
    %c0_i32_1 = arith.constant 0 : i32
    return %c0_i32, %c0_i32_0 : i32, i32
  }
  func.func @transform_3(%arg0: i32) -> (i32, i32) {
    %c0_i32 = arith.constant 0 : i32
    %c0_i32_0 = arith.constant 0 : i32
    %c0_i32_1 = arith.constant 0 : i32
    return %c0_i32, %c0_i32_0 : i32, i32
  }
  func.func @transform_4(%arg0: i32) -> (i32, i32) {
    %c0_i32 = arith.constant 0 : i32
    %c0_i32_0 = arith.constant 0 : i32
    %c0_i32_1 = arith.constant 0 : i32
    return %c0_i32, %c0_i32_0 : i32, i32
  }
  func.func @transform_5(%arg0: i32) -> (i32, i32) {
    %c0_i32 = arith.constant 0 : i32
    %c0_i32_0 = arith.constant 0 : i32
    return %arg0, %c0_i32 : i32, i32
  }
}

</mosaic_0001>

<llo_original>
// kernel: tpu_custom_call.1
$region0: #{tpu_custom_call.1}
  #allocation0 [shape = 'u32[]', space=smem, size = 0x4, offset = 0x4, fixed_abs, tag = 'smem constant byte address 0x4 - core index']
  #allocation1 [shape = 'u32[144,128]{1,0:T(1,128)}', space=vmem, size = 0x12000, scoped, tag = 'internal scratch']
  #allocation2 [shape = 'f32[1,1]{1,0:T(1,128)S(1)}', space=vmem, size = 0x200, scoped, tag = 'scoped memory for tpu_custom_call.1']
  %s0 = inlined_call_operand.hbm [shape: bf16[512,256], index: 0, kind: input, shape index: {}]
  %s1 = inlined_call_operand.hbm [shape: bf16[256,256], index: 1, kind: input, shape index: {}]
  %s2 = inlined_call_operand.vmem [shape: f32[1,256], index: 2, kind: input, shape index: {}]
  %s3 = inlined_call_operand.vmem [shape: f32[1,128], index: 3, kind: input, shape index: {}]
  %s4 = inlined_call_operand.<no memory space> [shape: f32[1,1], index: 4, kind: input, shape index: {}]
  %s5 = inlined_call_operand.vmem [shape: f32[512,1], index: 5, kind: output, shape index: {}]
  %s6 = sld [smem:[#allocation0]]
  $region61: #{tpu_custom_call.1} parent=0
    _
  %s8 = ssub.s32 1, %s6
  %s9 = scalar_select 0, %s8, %s6
  %v10 = vstv %s4
  %11 = vst [vmem:[#allocation2] sm:$0x1] %v10
  $region1: #{tpu_custom_call.1} parent=0
    #allocation3 [shape = 'u8[262144]{0}', space=vmem, size = 0x40000, scoped, tag = 'input window, operand 0']
    #allocation4 [shape = 's32[2]{0}', space=sflag, size = 0x8, scoped, tag = 'scoped memory for tpu_custom_call.1']
    #allocation5 [shape = 'u8[131072]{0}', space=vmem, size = 0x20000, scoped, tag = 'input window, operand 1, single buffered']
    #allocation6 [shape = 's32[1]{0}', space=sflag, size = 0x4, scoped, tag = 'scoped memory for tpu_custom_call.1']
    %12 = vsyncpa [#allocation4], 0
    %s13 = scalar_lea.sflag [#allocation4], 1
    %14 = vsyncpa %s13, 0
    %15 = vsyncpa [#allocation6], 0
    loop: start=0, step=1, limit=4
    $region2: #{tpu_custom_call.1} parent=1 // loop_pre_header
      _
    $region3: #{tpu_custom_call.1} parent=1 // loop_header
      %s17 = sphi 0, %s21
      %p18 = scmp.ge.s32.totalorder %s17, 4
      %s27 = sphi 0, %s29
      %s30 = sphi 0, %s27
      %s31 = sphi 0, %s30
      %s47 = sphi 0, %s31
      %s51 = sphi 0, %s51
      %s53 = sphi 0, %s51
      %s54 = sphi 0, %s53
      %s68 = sphi 0, %s54
      %s72 = sphi 0, %s72
      %s74 = sphi 0, %s72
      %s75 = sphi 0, %s74
      %s89 = sphi 0, %s75
      %s93 = sphi 0, %s93
      %s95 = sphi 0, %s93
      %s96 = sphi 0, %s95
      %s110 = sphi 0, %s96
      %s114 = sphi 0, %s114
      %s116 = sphi 0, %s114
      %s117 = sphi 0, %s116
      %s131 = sphi 0, %s117
      %s137 = sphi 0, %s139
      %s140 = sphi 0, %s137
      %s141 = sphi 0, %s140
      %s157 = sphi 0, %s141
    $region4: #{tpu_custom_call.1} parent=1 // loop_header_branch
      %20 = sbr.rel (%p18) target = $region8
    $region5: #{tpu_custom_call.1} parent=1 // loop_body
      %s22 = ssub.s32 %s17, 1
      %s23 = ssub.s32 %s17, 2
      %s24 = sadd.s32 %s17, 1
      %s25 = ssub.s32 %s17, %s24
      %p26 = scmp.eq.s32.totalorder %s25, 0
      %s28 = sadd.s32 %s27, 1
      %s29 = scalar_select %p26, %s27, %s28
      %p32 = pneg %p26
      %p33 = scmp.eq.s32.totalorder %s17, 1
      %p34 = por %p32, %p33
      %p35 = scmp.ne.s32.totalorder %s27, %s30
      %p36 = scmp.eq.s32.totalorder %s17, 0
      %p37 = por %p35, %p36
      %p38 = scmp.ne.s32.totalorder %s27, %s30
      %p39 = scmp.eq.s32.totalorder %s22, 1
      %p40 = por %p38, %p39
      %p41 = scmp.ne.s32.totalorder %s30, %s31
      %p42 = scmp.eq.s32.totalorder %s22, 0
      %p43 = por %p41, %p42
      %p44 = scmp.ne.s32.totalorder %s30, %s31
      %p45 = scmp.eq.s32.totalorder %s23, 1
      %p46 = por %p44, %p45
      %p48 = scmp.ne.s32.totalorder %s31, %s47
      %p49 = scmp.eq.s32.totalorder %s23, 0
      %p50 = por %p48, %p49
      %s52 = sadd.s32 %s51, 1
      %p55 = scmp.eq.s32.totalorder %s17, 1
      %p56 = scmp.ne.s32.totalorder %s51, %s53
      %p57 = scmp.eq.s32.totalorder %s17, 0
      %p58 = por %p56, %p57
      %p59 = scmp.ne.s32.totalorder %s51, %s53
      %p60 = scmp.eq.s32.totalorder %s22, 1
      %p61 = por %p59, %p60
      %p62 = scmp.ne.s32.totalorder %s53, %s54
      %p63 = scmp.eq.s32.totalorder %s22, 0
      %p64 = por %p62, %p63
      %p65 = scmp.ne.s32.totalorder %s53, %s54
      %p66 = scmp.eq.s32.totalorder %s23, 1
      %p67 = por %p65, %p66
      %p69 = scmp.ne.s32.totalorder %s54, %s68
      %p70 = scmp.eq.s32.totalorder %s23, 0
      %p71 = por %p69, %p70
      %s73 = sadd.s32 %s72, 1
      %p76 = scmp.eq.s32.totalorder %s17, 1
      %p77 = scmp.ne.s32.totalorder %s72, %s74
      %p78 = scmp.eq.s32.totalorder %s17, 0
      %p79 = por %p77, %p78
      %p80 = scmp.ne.s32.totalorder %s72, %s74
      %p81 = scmp.eq.s32.totalorder %s22, 1
      %p82 = por %p80, %p81
      %p83 = scmp.ne.s32.totalorder %s74, %s75
      %p84 = scmp.eq.s32.totalorder %s22, 0
      %p85 = por %p83, %p84
      %p86 = scmp.ne.s32.totalorder %s74, %s75
      %p87 = scmp.eq.s32.totalorder %s23, 1
      %p88 = por %p86, %p87
      %p90 = scmp.ne.s32.totalorder %s75, %s89
      %p91 = scmp.eq.s32.totalorder %s23, 0
      %p92 = por %p90, %p91
      %s94 = sadd.s32 %s93, 1
      %p97 = scmp.eq.s32.totalorder %s17, 1
      %p98 = scmp.ne.s32.totalorder %s93, %s95
      %p99 = scmp.eq.s32.totalorder %s17, 0
      %p100 = por %p98, %p99
      %p101 = scmp.ne.s32.totalorder %s93, %s95
      %p102 = scmp.eq.s32.totalorder %s22, 1
      %p103 = por %p101, %p102
      %p104 = scmp.ne.s32.totalorder %s95, %s96
      %p105 = scmp.eq.s32.totalorder %s22, 0
      %p106 = por %p104, %p105
      %p107 = scmp.ne.s32.totalorder %s95, %s96
      %p108 = scmp.eq.s32.totalorder %s23, 1
      %p109 = por %p107, %p108
      %p111 = scmp.ne.s32.totalorder %s96, %s110
      %p112 = scmp.eq.s32.totalorder %s23, 0
      %p113 = por %p111, %p112
      %s115 = sadd.s32 %s114, 1
      %p118 = scmp.eq.s32.totalorder %s17, 1
      %p119 = scmp.ne.s32.totalorder %s114, %s116
      %p120 = scmp.eq.s32.totalorder %s17, 0
      %p121 = por %p119, %p120
      %p122 = scmp.ne.s32.totalorder %s114, %s116
      %p123 = scmp.eq.s32.totalorder %s22, 1
      %p124 = por %p122, %p123
      %p125 = scmp.ne.s32.totalorder %s116, %s117
      %p126 = scmp.eq.s32.totalorder %s22, 0
      %p127 = por %p125, %p126
      %p128 = scmp.ne.s32.totalorder %s116, %s117
      %p129 = scmp.eq.s32.totalorder %s23, 1
      %p130 = por %p128, %p129
      %p132 = scmp.ne.s32.totalorder %s117, %s131
      %p133 = scmp.eq.s32.totalorder %s23, 0
      %p134 = por %p132, %p133
      %s135 = ssub.s32 %s17, %s24
      %p136 = scmp.eq.s32.totalorder %s135, 0
      %s138 = sadd.s32 %s137, 1
      %s139 = scalar_select %p136, %s137, %s138
      %p142 = pneg %p136
      %p143 = scmp.eq.s32.totalorder %s17, 1
      %p144 = por %p142, %p143
      %p145 = scmp.ne.s32.totalorder %s137, %s140
      %p146 = scmp.eq.s32.totalorder %s17, 0
      %p147 = por %p145, %p146
      %p148 = scmp.ne.s32.totalorder %s137, %s140
      %p149 = scmp.eq.s32.totalorder %s22, 1
      %p150 = por %p148, %p149
      %p151 = scmp.ne.s32.totalorder %s140, %s141
      %p152 = scmp.eq.s32.totalorder %s22, 0
      %p153 = por %p151, %p152
      %p154 = scmp.ne.s32.totalorder %s140, %s141
      %p155 = scmp.eq.s32.totalorder %s23, 1
      %p156 = por %p154, %p155
      %p158 = scmp.ne.s32.totalorder %s141, %s157
      %p159 = scmp.eq.s32.totalorder %s23, 0
      %p160 = por %p158, %p159
      %p161 = scmp.le.s32.totalorder 1, %s17
      %p162 = scmp.lt.s32.totalorder %s17, 3
      %p163 = pnand %p161, %p162
      %p164 = pneg %p163
      // Predicated region
      $region9: #{tpu_custom_call.1} parent=5 // pred_check
        _
      $region10: #{tpu_custom_call.1} parent=5 // pred_check_branch
        %166 = sbr.rel (%p163) target = $region12
      $region11: #{tpu_custom_call.1} parent=5 // pred_region
        %s167 = ssub.s32 %s17, 1
        // Predicated region
        $region13: #{tpu_custom_call.1} parent=11 // pred_check
          %p168 = pneg %p64
        $region14: #{tpu_custom_call.1} parent=11 // pred_check_branch
          %170 = sbr.rel (%p168) target = $region16
        $region15: #{tpu_custom_call.1} parent=11 // pred_region
          %s172 = ssub.s32 4096, 4096
          %173 = vsyncadd [#allocation6], %s172
          %s174 = sshll.u32 [#allocation5], 4
          %s175 = int_to_ptr.vmem [resolvable:$true] %s174
          %180 = dma.hbm_to_vmem [thread:$0]  %s1, 4096, %s175, [#allocation6], 128, 128, 8
        $region16: #{tpu_custom_call.1} parent=11 // pred_fallthru
          _
        // Predicated region
        $region17: #{tpu_custom_call.1} parent=11 // pred_check
          %p181 = pneg %p85
        $region18: #{tpu_custom_call.1} parent=11 // pred_check_branch
          %183 = sbr.rel (%p181) target = $region20
        $region19: #{tpu_custom_call.1} parent=11 // pred_region
          _
        $region20: #{tpu_custom_call.1} parent=11 // pred_fallthru
          _
        // Predicated region
        $region21: #{tpu_custom_call.1} parent=11 // pred_check
          %p184 = pneg %p106
        $region22: #{tpu_custom_call.1} parent=11 // pred_check_branch
          %186 = sbr.rel (%p184) target = $region24
        $region23: #{tpu_custom_call.1} parent=11 // pred_region
          _
        $region24: #{tpu_custom_call.1} parent=11 // pred_fallthru
          _
        // Predicated region
        $region25: #{tpu_custom_call.1} parent=11 // pred_check
          %p187 = pneg %p127
        $region26: #{tpu_custom_call.1} parent=11 // pred_check_branch
          %189 = sbr.rel (%p187) target = $region28
        $region27: #{tpu_custom_call.1} parent=11 // pred_region
          _
        $region28: #{tpu_custom_call.1} parent=11 // pred_fallthru
          _
      $region12: #{tpu_custom_call.1} parent=5 // pred_fallthru
        _
      %p190 = scmp.lt.s32.totalorder %s17, 2
      // Predicated region
      $region29: #{tpu_custom_call.1} parent=5 // pred_check
        %p191 = pneg %p190
      $region30: #{tpu_custom_call.1} parent=5 // pred_check_branch
        %193 = sbr.rel (%p191) target = $region32
      $region31: #{tpu_custom_call.1} parent=5 // pred_region
        // Predicated region
        $region33: #{tpu_custom_call.1} parent=31 // pred_check
          %p194 = pneg %p37
        $region34: #{tpu_custom_call.1} parent=31 // pred_check_branch
          %196 = sbr.rel (%p194) target = $region36
        $region35: #{tpu_custom_call.1} parent=31 // pred_region
          %s197 = sand.u32 %s27, 1
          %s198 = scalar_lea.sflag [#allocation4], %s197
          %s199 = sand.u32 %s27, 1
          %s200 = smul.addr %s199, 256
          %s201 = scalar_lea.vmem [#allocation3], %s200
          %s202 = smul.u32 32, %s17
          %s204 = ssub.s32 4096, 4096
          %205 = vsyncadd %s198, %s204
          %s206 = smul.addr %s202, 2
          %s207 = smul.addr %s206, 64
          %s208 = scalar_lea.hbm %s0, %s207
          %s209 = sshll.u32 %s201, 4
          %s210 = int_to_ptr.vmem [resolvable:$true] %s209
          %215 = dma.hbm_to_vmem [thread:$0]  %s208, 4096, %s210, %s198, 128, 128, 8
        $region36: #{tpu_custom_call.1} parent=31 // pred_fallthru
          _
      $region32: #{tpu_custom_call.1} parent=5 // pred_fallthru
        _
      %p216 = scmp.le.s32.totalorder 1, %s17
      %p217 = scmp.lt.s32.totalorder %s17, 3
      %p218 = pnand %p216, %p217
      %p219 = pneg %p218
      // Predicated region
      $region37: #{tpu_custom_call.1} parent=5 // pred_check
        _
      $region38: #{tpu_custom_call.1} parent=5 // pred_check_branch
        %221 = sbr.rel (%p218) target = $region40
      $region39: #{tpu_custom_call.1} parent=5 // pred_region
        %s222 = ssub.s32 %s17, 1
        %s223 = sand.u32 %s30, 1
        %s224 = scalar_lea.sflag [#allocation4], %s223
        %s225 = sand.u32 %s30, 1
        %s226 = smul.addr %s225, 256
        %s227 = scalar_lea.vmem [#allocation3], %s226
        // Predicated region
        $region41: #{tpu_custom_call.1} parent=39 // pred_check
          %p228 = pneg %p43
        $region42: #{tpu_custom_call.1} parent=39 // pred_check_branch
          %230 = sbr.rel (%p228) target = $region44
        $region43: #{tpu_custom_call.1} parent=39 // pred_region
          %231 = dma.done %s224, 4096
        $region44: #{tpu_custom_call.1} parent=39 // pred_fallthru
          _
        // Predicated region
        $region45: #{tpu_custom_call.1} parent=39 // pred_check
          %p232 = pneg %p64
        $region46: #{tpu_custom_call.1} parent=39 // pred_check_branch
          %234 = sbr.rel (%p232) target = $region48
        $region47: #{tpu_custom_call.1} parent=39 // pred_region
          %235 = dma.done [#allocation6], 4096
        $region48: #{tpu_custom_call.1} parent=39 // pred_fallthru
          _
        %s236 = sand.u32 %s30, 1
        %s237 = scalar_lea.sflag [#allocation4], %s236
        %s238 = sand.u32 %s30, 1
        %s239 = smul.addr %s238, 256
        %s240 = scalar_lea.vmem [#allocation3], %s239
        %p241 = pneg %p43
        %p242 = pneg %p40
        %p243 = pneg %p64
        %p244 = pneg %p61
        %p245 = pneg %p85
        %p246 = pneg %p82
        %p247 = pneg %p106
        %p248 = pneg %p103
        %p249 = pneg %p127
        %p250 = pneg %p124
        %p251 = pneg %p153
        %p252 = pneg %p150
        %s253 = smul.u32 32, %s22
        %p254 = scmp.lt.s32.totalorder %s253, 63
        %s255 = scalar_select %p254, %s253, 63
        %s256 = smul.addr %s255, 8
        %s257 = scalar_lea.vmem %s5, %s256
        %s258 = smul.u32 32, %s22
        %s259 = smul.u32 32, %s22
        %p260 = scmp.lt.s32.totalorder %s259, 63
        %s261 = scalar_select %p260, %s259, 63
        %s262 = smul.addr %s261, 8
        %s263 = scalar_lea.vmem %s5, %s262
        %s264 = smul.u32 32, %s22
        %v265 = vld [vmem:[%s227] sm:$0xff]
        %v266 = vld [vmem:[%s227 + $0x8] sm:$0xff]
        %v267 = vld [vmem:[%s227 + $0x10] sm:$0xff]
        %v268 = vld [vmem:[%s227 + $0x18] sm:$0xff]
        %v269 = vld [vmem:[%s227 + $0x20] sm:$0xff]
        %v270 = vld [vmem:[%s227 + $0x28] sm:$0xff]
        %v271 = vld [vmem:[%s227 + $0x30] sm:$0xff]
        %v272 = vld [vmem:[%s227 + $0x38] sm:$0xff]
        %v273 = vld [vmem:[%s227 + $0x40] sm:$0xff]
        %v274 = vld [vmem:[%s227 + $0x48] sm:$0xff]
        %v275 = vld [vmem:[%s227 + $0x50] sm:$0xff]
        %v276 = vld [vmem:[%s227 + $0x58] sm:$0xff]
        %v277 = vld [vmem:[%s227 + $0x60] sm:$0xff]
        %v278 = vld [vmem:[%s227 + $0x68] sm:$0xff]
        %v279 = vld [vmem:[%s227 + $0x70] sm:$0xff]
        %v280 = vld [vmem:[%s227 + $0x78] sm:$0xff]
        %v281 = vld [vmem:[%s227 + $0x80] sm:$0xff]
        %v282 = vld [vmem:[%s227 + $0x88] sm:$0xff]
        %v283 = vld [vmem:[%s227 + $0x90] sm:$0xff]
        %v284 = vld [vmem:[%s227 + $0x98] sm:$0xff]
        %v285 = vld [vmem:[%s227 + $0xa0] sm:$0xff]
        %v286 = vld [vmem:[%s227 + $0xa8] sm:$0xff]
        %v287 = vld [vmem:[%s227 + $0xb0] sm:$0xff]
        %v288 = vld [vmem:[%s227 + $0xb8] sm:$0xff]
        %v289 = vld [vmem:[%s227 + $0xc0] sm:$0xff]
        %v290 = vld [vmem:[%s227 + $0xc8] sm:$0xff]
        %v291 = vld [vmem:[%s227 + $0xd0] sm:$0xff]
        %v292 = vld [vmem:[%s227 + $0xd8] sm:$0xff]
        %v293 = vld [vmem:[%s227 + $0xe0] sm:$0xff]
        %v294 = vld [vmem:[%s227 + $0xe8] sm:$0xff]
        %v295 = vld [vmem:[%s227 + $0xf0] sm:$0xff]
        %v296 = vld [vmem:[%s227 + $0xf8] sm:$0xff]
        %v297 = vld [vmem:[#allocation5] sm:$0xff]
        %v298 = vld [vmem:[#allocation5 + $0x8] sm:$0xff]
        %v299 = vld [vmem:[#allocation5 + $0x10] sm:$0xff]
        %v300 = vld [vmem:[#allocation5 + $0x18] sm:$0xff]
        %v301 = vld [vmem:[#allocation5 + $0x20] sm:$0xff]
        %v302 = vld [vmem:[#allocation5 + $0x28] sm:$0xff]
        %v303 = vld [vmem:[#allocation5 + $0x30] sm:$0xff]
        %v304 = vld [vmem:[#allocation5 + $0x38] sm:$0xff]
        %v305 = vld [vmem:[#allocation5 + $0x40] sm:$0xff]
        %v306 = vld [vmem:[#allocation5 + $0x48] sm:$0xff]
        %v307 = vld [vmem:[#allocation5 + $0x50] sm:$0xff]
        %v308 = vld [vmem:[#allocation5 + $0x58] sm:$0xff]
        %v309 = vld [vmem:[#allocation5 + $0x60] sm:$0xff]
        %v310 = vld [vmem:[#allocation5 + $0x68] sm:$0xff]
        %v311 = vld [vmem:[#allocation5 + $0x70] sm:$0xff]
        %v312 = vld [vmem:[#allocation5 + $0x78] sm:$0xff]
        %v313 = vld [vmem:[#allocation5 + $0x80] sm:$0xff]
        %v314 = vld [vmem:[#allocation5 + $0x88] sm:$0xff]
        %v315 = vld [vmem:[#allocation5 + $0x90] sm:$0xff]
        %v316 = vld [vmem:[#allocation5 + $0x98] sm:$0xff]
        %v317 = vld [vmem:[#allocation5 + $0xa0] sm:$0xff]
        %v318 = vld [vmem:[#allocation5 + $0xa8] sm:$0xff]
        %v319 = vld [vmem:[#allocation5 + $0xb0] sm:$0xff]
        %v320 = vld [vmem:[#allocation5 + $0xb8] sm:$0xff]
        %v321 = vld [vmem:[#allocation5 + $0xc0] sm:$0xff]
        %v322 = vld [vmem:[#allocation5 + $0xc8] sm:$0xff]
        %v323 = vld [vmem:[#allocation5 + $0xd0] sm:$0xff]
        %v324 = vld [vmem:[#allocation5 + $0xd8] sm:$0xff]
        %v325 = vld [vmem:[#allocation5 + $0xe0] sm:$0xff]
        %v326 = vld [vmem:[#allocation5 + $0xe8] sm:$0xff]
        %v327 = vld [vmem:[#allocation5 + $0xf0] sm:$0xff]
        %v328 = vld [vmem:[#allocation5 + $0xf8] sm:$0xff]
        %v329 = vld [vmem:[%s2] sm:$0x3]
        %v331 = vlaneseq
        %v332 = vshrl.u32 %v331, 7
        %v333 = vsub.s32 0, %v332
        %v334 = vrot.slane %v329, %v333
        %v335 = vlaneseq
        %v336 = vshrl.u32 %v335, 7
        %v337 = vsub.s32 1, %v336
        %v338 = vrot.slane %v329, %v337
        %v373 = vunpack.c.l.b16 %v265
        %v374 = vunpack.c.h.b16 %v265
        %v375 = vunpack.c.l.b16 %v266
        %v376 = vunpack.c.h.b16 %v266
        %v377 = vunpack.c.l.b16 %v267
        %v378 = vunpack.c.h.b16 %v267
        %v379 = vunpack.c.l.b16 %v268
        %v380 = vunpack.c.h.b16 %v268
        %v381 = vunpack.c.l.b16 %v269
        %v382 = vunpack.c.h.b16 %v269
        %v383 = vunpack.c.l.b16 %v270
        %v384 = vunpack.c.h.b16 %v270
        %v385 = vunpack.c.l.b16 %v271
        %v386 = vunpack.c.h.b16 %v271
        %v387 = vunpack.c.l.b16 %v272
        %v388 = vunpack.c.h.b16 %v272
        %v389 = vunpack.c.l.b16 %v273
        %v390 = vunpack.c.h.b16 %v273
        %v391 = vunpack.c.l.b16 %v274
        %v392 = vunpack.c.h.b16 %v274
        %v393 = vunpack.c.l.b16 %v275
        %v394 = vunpack.c.h.b16 %v275
        %v395 = vunpack.c.l.b16 %v276
        %v396 = vunpack.c.h.b16 %v276
        %v397 = vunpack.c.l.b16 %v277
        %v398 = vunpack.c.h.b16 %v277
        %v399 = vunpack.c.l.b16 %v278
        %v400 = vunpack.c.h.b16 %v278
        %v401 = vunpack.c.l.b16 %v279
        %v402 = vunpack.c.h.b16 %v279
        %v403 = vunpack.c.l.b16 %v280
        %v404 = vunpack.c.h.b16 %v280
        %v405 = vunpack.c.l.b16 %v281
        %v406 = vunpack.c.h.b16 %v281
        %v407 = vunpack.c.l.b16 %v282
        %v408 = vunpack.c.h.b16 %v282
        %v409 = vunpack.c.l.b16 %v283
        %v410 = vunpack.c.h.b16 %v283
        %v411 = vunpack.c.l.b16 %v284
        %v412 = vunpack.c.h.b16 %v284
        %v413 = vunpack.c.l.b16 %v285
        %v414 = vunpack.c.h.b16 %v285
        %v415 = vunpack.c.l.b16 %v286
        %v416 = vunpack.c.h.b16 %v286
        %v417 = vunpack.c.l.b16 %v287
        %v418 = vunpack.c.h.b16 %v287
        %v419 = vunpack.c.l.b16 %v288
        %v420 = vunpack.c.h.b16 %v288
        %v421 = vunpack.c.l.b16 %v289
        %v422 = vunpack.c.h.b16 %v289
        %v423 = vunpack.c.l.b16 %v290
        %v424 = vunpack.c.h.b16 %v290
        %v425 = vunpack.c.l.b16 %v291
        %v426 = vunpack.c.h.b16 %v291
        %v427 = vunpack.c.l.b16 %v292
        %v428 = vunpack.c.h.b16 %v292
        %v429 = vunpack.c.l.b16 %v293
        %v430 = vunpack.c.h.b16 %v293
        %v431 = vunpack.c.l.b16 %v294
        %v432 = vunpack.c.h.b16 %v294
        %v433 = vunpack.c.l.b16 %v295
        %v434 = vunpack.c.h.b16 %v295
        %v435 = vunpack.c.l.b16 %v296
        %v436 = vunpack.c.h.b16 %v296
        %v437 = vpack.c.b16 %v375, %v373
        %v438 = vpack.c.b16 %v376, %v374
        %v439 = vpack.c.b16 %v379, %v377
        %v440 = vpack.c.b16 %v380, %v378
        %v441 = vpack.c.b16 %v383, %v381
        %v442 = vpack.c.b16 %v384, %v382
        %v443 = vpack.c.b16 %v387, %v385
        %v444 = vpack.c.b16 %v388, %v386
        %v445 = vpack.c.b16 %v391, %v389
        %v446 = vpack.c.b16 %v392, %v390
        %v447 = vpack.c.b16 %v395, %v393
        %v448 = vpack.c.b16 %v396, %v394
        %v449 = vpack.c.b16 %v399, %v397
        %v450 = vpack.c.b16 %v400, %v398
        %v451 = vpack.c.b16 %v403, %v401
        %v452 = vpack.c.b16 %v404, %v402
        %v453 = vpack.c.b16 %v407, %v405
        %v454 = vpack.c.b16 %v408, %v406
        %v455 = vpack.c.b16 %v411, %v409
        %v456 = vpack.c.b16 %v412, %v410
        %v457 = vpack.c.b16 %v415, %v413
        %v458 = vpack.c.b16 %v416, %v414
        %v459 = vpack.c.b16 %v419, %v417
        %v460 = vpack.c.b16 %v420, %v418
        %v461 = vpack.c.b16 %v423, %v421
        %v462 = vpack.c.b16 %v424, %v422
        %v463 = vpack.c.b16 %v427, %v425
        %v464 = vpack.c.b16 %v428, %v426
        %v465 = vpack.c.b16 %v431, %v429
        %v466 = vpack.c.b16 %v432, %v430
        %v467 = vpack.c.b16 %v435, %v433
        %v468 = vpack.c.b16 %v436, %v434
        %v533 = vunpack.c.l.b16 %v297
        %v534 = vunpack.c.h.b16 %v297
        %v535 = vunpack.c.l.b16 %v298
        %v536 = vunpack.c.h.b16 %v298
        %v537 = vunpack.c.l.b16 %v299
        %v538 = vunpack.c.h.b16 %v299
        %v539 = vunpack.c.l.b16 %v300
        %v540 = vunpack.c.h.b16 %v300
        %v541 = vunpack.c.l.b16 %v301
        %v542 = vunpack.c.h.b16 %v301
        %v543 = vunpack.c.l.b16 %v302
        %v544 = vunpack.c.h.b16 %v302
        %v545 = vunpack.c.l.b16 %v303
        %v546 = vunpack.c.h.b16 %v303
        %v547 = vunpack.c.l.b16 %v304
        %v548 = vunpack.c.h.b16 %v304
        %v549 = vunpack.c.l.b16 %v305
        %v550 = vunpack.c.h.b16 %v305
        %v551 = vunpack.c.l.b16 %v306
        %v552 = vunpack.c.h.b16 %v306
        %v553 = vunpack.c.l.b16 %v307
        %v554 = vunpack.c.h.b16 %v307
        %v555 = vunpack.c.l.b16 %v308
        %v556 = vunpack.c.h.b16 %v308
        %v557 = vunpack.c.l.b16 %v309
        %v558 = vunpack.c.h.b16 %v309
        %v559 = vunpack.c.l.b16 %v310
        %v560 = vunpack.c.h.b16 %v310
        %v561 = vunpack.c.l.b16 %v311
        %v562 = vunpack.c.h.b16 %v311
        %v563 = vunpack.c.l.b16 %v312
        %v564 = vunpack.c.h.b16 %v312
        %v565 = vunpack.c.l.b16 %v313
        %v566 = vunpack.c.h.b16 %v313
        %v567 = vunpack.c.l.b16 %v314
        %v568 = vunpack.c.h.b16 %v314
        %v569 = vunpack.c.l.b16 %v315
        %v570 = vunpack.c.h.b16 %v315
        %v571 = vunpack.c.l.b16 %v316
        %v572 = vunpack.c.h.b16 %v316
        %v573 = vunpack.c.l.b16 %v317
        %v574 = vunpack.c.h.b16 %v317
        %v575 = vunpack.c.l.b16 %v318
        %v576 = vunpack.c.h.b16 %v318
        %v577 = vunpack.c.l.b16 %v319
        %v578 = vunpack.c.h.b16 %v319
        %v579 = vunpack.c.l.b16 %v320
        %v580 = vunpack.c.h.b16 %v320
        %v581 = vunpack.c.l.b16 %v321
        %v582 = vunpack.c.h.b16 %v321
        %v583 = vunpack.c.l.b16 %v322
        %v584 = vunpack.c.h.b16 %v322
        %v585 = vunpack.c.l.b16 %v323
        %v586 = vunpack.c.h.b16 %v323
        %v587 = vunpack.c.l.b16 %v324
        %v588 = vunpack.c.h.b16 %v324
        %v589 = vunpack.c.l.b16 %v325
        %v590 = vunpack.c.h.b16 %v325
        %v591 = vunpack.c.l.b16 %v326
        %v592 = vunpack.c.h.b16 %v326
        %v593 = vunpack.c.l.b16 %v327
        %v594 = vunpack.c.h.b16 %v327
        %v595 = vunpack.c.l.b16 %v328
        %v596 = vunpack.c.h.b16 %v328
        %v597 = vpack.c.b16 %v535, %v533
        %v598 = vpack.c.b16 %v536, %v534
        %v599 = vpack.c.b16 %v539, %v537
        %v600 = vpack.c.b16 %v540, %v538
        %v601 = vpack.c.b16 %v543, %v541
        %v602 = vpack.c.b16 %v544, %v542
        %v603 = vpack.c.b16 %v547, %v545
        %v604 = vpack.c.b16 %v548, %v546
        %v605 = vpack.c.b16 %v551, %v549
        %v606 = vpack.c.b16 %v552, %v550
        %v607 = vpack.c.b16 %v555, %v553
        %v608 = vpack.c.b16 %v556, %v554
        %v609 = vpack.c.b16 %v559, %v557
        %v610 = vpack.c.b16 %v560, %v558
        %v611 = vpack.c.b16 %v563, %v561
        %v612 = vpack.c.b16 %v564, %v562
        %v613 = vpack.c.b16 %v567, %v565
        %v614 = vpack.c.b16 %v568, %v566
        %v615 = vpack.c.b16 %v571, %v569
        %v616 = vpack.c.b16 %v572, %v570
        %v617 = vpack.c.b16 %v575, %v573
        %v618 = vpack.c.b16 %v576, %v574
        %v619 = vpack.c.b16 %v579, %v577
        %v620 = vpack.c.b16 %v580, %v578
        %v621 = vpack.c.b16 %v583, %v581
        %v622 = vpack.c.b16 %v584, %v582
        %v623 = vpack.c.b16 %v587, %v585
        %v624 = vpack.c.b16 %v588, %v586
        %v625 = vpack.c.b16 %v591, %v589
        %v626 = vpack.c.b16 %v592, %v590
        %v627 = vpack.c.b16 %v595, %v593
        %v628 = vpack.c.b16 %v596, %v594
        %661 = vmatprep.subr.bf16.mxu0 %v598
        %662 = vmatpush1.bf16.msra.mxu0 %v597
        %663 = vmatprep.subr.bf16.mxu0 %v600
        %664 = vmatpush1.bf16.msra.mxu0 %v599
        %665 = vmatprep.subr.bf16.mxu0 %v602
        %666 = vmatpush1.bf16.msra.mxu0 %v601
        %667 = vmatprep.subr.bf16.mxu0 %v604
        %668 = vmatpush1.bf16.msra.mxu0 %v603
        %669 = vmatprep.subr.bf16.mxu0 %v606
        %670 = vmatpush1.bf16.msra.mxu0 %v605
        %671 = vmatprep.subr.bf16.mxu0 %v608
        %672 = vmatpush1.bf16.msra.mxu0 %v607
        %673 = vmatprep.subr.bf16.mxu0 %v610
        %674 = vmatpush1.bf16.msra.mxu0 %v609
        %675 = vmatprep.subr.bf16.mxu0 %v612
        %676 = vmatpush1.bf16.msra.mxu0 %v611
        %677 = vmatprep.subr.bf16.mxu0 %v614
        %678 = vmatpush1.bf16.msra.mxu0 %v613
        %679 = vmatprep.subr.bf16.mxu0 %v616
        %680 = vmatpush1.bf16.msra.mxu0 %v615
        %681 = vmatprep.subr.bf16.mxu0 %v618
        %682 = vmatpush1.bf16.msra.mxu0 %v617
        %683 = vmatprep.subr.bf16.mxu0 %v620
        %684 = vmatpush1.bf16.msra.mxu0 %v619
        %685 = vmatprep.subr.bf16.mxu0 %v622
        %686 = vmatpush1.bf16.msra.mxu0 %v621
        %687 = vmatprep.subr.bf16.mxu0 %v624
        %688 = vmatpush1.bf16.msra.mxu0 %v623
        %689 = vmatprep.subr.bf16.mxu0 %v626
        %690 = vmatpush1.bf16.msra.mxu0 %v625
        %691 = vmatprep.subr.bf16.mxu0 %v628
        %692 = vmatpush1.bf16.msra.mxu0 %v627
        %693 = vmatprep.mubr.bf16.mxu0 %v438
        %694 = vmatmul.mubr.bf16.gmra.mrb[0].mxu0 %v437
        %v695 = vpop.f32.mrb[0].mxu0
        %v696 = vadd.f32 %v334, %v695
        %v697 = vpop.f32.mrb[0].mxu0
        %v698 = vadd.f32 %v338, %v697
        %v699 = vpop.f32.mrb[0].mxu0
        %v700 = vadd.f32 %v334, %v699
        %v701 = vpop.f32.mrb[0].mxu0
        %v702 = vadd.f32 %v338, %v701
        %703 = vmatprep.mubr.bf16.mxu0 %v440
        %704 = vmatmul.mubr.bf16.gmra.mrb[0].mxu0 %v439
        %v705 = vpop.f32.mrb[0].mxu0
        %v706 = vadd.f32 %v334, %v705
        %v707 = vpop.f32.mrb[0].mxu0
        %v708 = vadd.f32 %v338, %v707
        %v709 = vpop.f32.mrb[0].mxu0
        %v710 = vadd.f32 %v334, %v709
        %v711 = vpop.f32.mrb[0].mxu0
        %v712 = vadd.f32 %v338, %v711
        %713 = vmatprep.mubr.bf16.mxu0 %v442
        %714 = vmatmul.mubr.bf16.gmra.mrb[0].mxu0 %v441
        %v715 = vpop.f32.mrb[0].mxu0
        %v716 = vadd.f32 %v334, %v715
        %v717 = vpop.f32.mrb[0].mxu0
        %v718 = vadd.f32 %v338, %v717
        %v719 = vpop.f32.mrb[0].mxu0
        %v720 = vadd.f32 %v334, %v719
        %v721 = vpop.f32.mrb[0].mxu0
        %v722 = vadd.f32 %v338, %v721
        %723 = vmatprep.mubr.bf16.mxu0 %v444
        %724 = vmatmul.mubr.bf16.gmra.mrb[0].mxu0 %v443
        %v725 = vpop.f32.mrb[0].mxu0
        %v726 = vadd.f32 %v334, %v725
        %v727 = vpop.f32.mrb[0].mxu0
        %v728 = vadd.f32 %v338, %v727
        %v729 = vpop.f32.mrb[0].mxu0
        %v730 = vadd.f32 %v334, %v729
        %v731 = vpop.f32.mrb[0].mxu0
        %v732 = vadd.f32 %v338, %v731
        %733 = vmatprep.mubr.bf16.mxu0 %v446
        %734 = vmatmul.mubr.bf16.gmra.mrb[0].mxu0 %v445
        %v735 = vpop.f32.mrb[0].mxu0
        %v736 = vadd.f32 %v334, %v735
        %v737 = vpop.f32.mrb[0].mxu0
        %v738 = vadd.f32 %v338, %v737
        %v739 = vpop.f32.mrb[0].mxu0
        %v740 = vadd.f32 %v334, %v739
        %v741 = vpop.f32.mrb[0].mxu0
        %v742 = vadd.f32 %v338, %v741
        %743 = vmatprep.mubr.bf16.mxu0 %v448
        %744 = vmatmul.mubr.bf16.gmra.mrb[0].mxu0 %v447
        %v745 = vpop.f32.mrb[0].mxu0
        %v746 = vadd.f32 %v334, %v745
        %v747 = vpop.f32.mrb[0].mxu0
        %v748 = vadd.f32 %v338, %v747
        %v749 = vpop.f32.mrb[0].mxu0
        %v750 = vadd.f32 %v334, %v749
        %v751 = vpop.f32.mrb[0].mxu0
        %v752 = vadd.f32 %v338, %v751
        %753 = vmatprep.mubr.bf16.mxu0 %v450
        %754 = vmatmul.mubr.bf16.gmra.mrb[0].mxu0 %v449
        %v755 = vpop.f32.mrb[0].mxu0
        %v756 = vadd.f32 %v334, %v755
        %v757 = vpop.f32.mrb[0].mxu0
        %v758 = vadd.f32 %v338, %v757
        %v759 = vpop.f32.mrb[0].mxu0
        %v760 = vadd.f32 %v334, %v759
        %v761 = vpop.f32.mrb[0].mxu0
        %v762 = vadd.f32 %v338, %v761
        %763 = vmatprep.mubr.bf16.mxu0 %v452
        %764 = vmatmul.mubr.bf16.gmra.mrb[0].mxu0 %v451
        %v765 = vpop.f32.mrb[0].mxu0
        %v766 = vadd.f32 %v334, %v765
        %v767 = vpop.f32.mrb[0].mxu0
        %v768 = vadd.f32 %v338, %v767
        %v769 = vpop.f32.mrb[0].mxu0
        %v770 = vadd.f32 %v334, %v769
        %v771 = vpop.f32.mrb[0].mxu0
        %v772 = vadd.f32 %v338, %v771
        %773 = vmatprep.mubr.bf16.mxu0 %v454
        %774 = vmatmul.mubr.bf16.gmra.mrb[0].mxu0 %v453
        %v775 = vpop.f32.mrb[0].mxu0
        %v776 = vadd.f32 %v334, %v775
        %v777 = vpop.f32.mrb[0].mxu0
        %v778 = vadd.f32 %v338, %v777
        %v779 = vpop.f32.mrb[0].mxu0
        %v780 = vadd.f32 %v334, %v779
        %v781 = vpop.f32.mrb[0].mxu0
        %v782 = vadd.f32 %v338, %v781
        %783 = vmatprep.mubr.bf16.mxu0 %v456
        %784 = vmatmul.mubr.bf16.gmra.mrb[0].mxu0 %v455
        %v785 = vpop.f32.mrb[0].mxu0
        %v786 = vadd.f32 %v334, %v785
        %v787 = vpop.f32.mrb[0].mxu0
        %v788 = vadd.f32 %v338, %v787
        %v789 = vpop.f32.mrb[0].mxu0
        %v790 = vadd.f32 %v334, %v789
        %v791 = vpop.f32.mrb[0].mxu0
        %v792 = vadd.f32 %v338, %v791
        %793 = vmatprep.mubr.bf16.mxu0 %v458
        %794 = vmatmul.mubr.bf16.gmra.mrb[0].mxu0 %v457
        %v795 = vpop.f32.mrb[0].mxu0
        %v796 = vadd.f32 %v334, %v795
        %v797 = vpop.f32.mrb[0].mxu0
        %v798 = vadd.f32 %v338, %v797
        %v799 = vpop.f32.mrb[0].mxu0
        %v800 = vadd.f32 %v334, %v799
        %v801 = vpop.f32.mrb[0].mxu0
        %v802 = vadd.f32 %v338, %v801
        %803 = vmatprep.mubr.bf16.mxu0 %v460
        %804 = vmatmul.mubr.bf16.gmra.mrb[0].mxu0 %v459
        %v805 = vpop.f32.mrb[0].mxu0
        %v806 = vadd.f32 %v334, %v805
        %v807 = vpop.f32.mrb[0].mxu0
        %v808 = vadd.f32 %v338, %v807
        %v809 = vpop.f32.mrb[0].mxu0
        %v810 = vadd.f32 %v334, %v809
        %v811 = vpop.f32.mrb[0].mxu0
        %v812 = vadd.f32 %v338, %v811
        %813 = vmatprep.mubr.bf16.mxu0 %v462
        %814 = vmatmul.mubr.bf16.gmra.mrb[0].mxu0 %v461
        %v815 = vpop.f32.mrb[0].mxu0
        %v816 = vadd.f32 %v334, %v815
        %v817 = vpop.f32.mrb[0].mxu0
        %v818 = vadd.f32 %v338, %v817
        %v819 = vpop.f32.mrb[0].mxu0
        %v820 = vadd.f32 %v334, %v819
        %v821 = vpop.f32.mrb[0].mxu0
        %v822 = vadd.f32 %v338, %v821
        %823 = vmatprep.mubr.bf16.mxu0 %v464
        %824 = vmatmul.mubr.bf16.gmra.mrb[0].mxu0 %v463
        %v825 = vpop.f32.mrb[0].mxu0
        %v826 = vadd.f32 %v334, %v825
        %v827 = vpop.f32.mrb[0].mxu0
        %v828 = vadd.f32 %v338, %v827
        %v829 = vpop.f32.mrb[0].mxu0
        %v830 = vadd.f32 %v334, %v829
        %v831 = vpop.f32.mrb[0].mxu0
        %v832 = vadd.f32 %v338, %v831
        %833 = vmatprep.mubr.bf16.mxu0 %v466
        %834 = vmatmul.mubr.bf16.gmra.mrb[0].mxu0 %v465
        %v835 = vpop.f32.mrb[0].mxu0
        %v836 = vadd.f32 %v334, %v835
        %v837 = vpop.f32.mrb[0].mxu0
        %v838 = vadd.f32 %v338, %v837
        %v839 = vpop.f32.mrb[0].mxu0
        %v840 = vadd.f32 %v334, %v839
        %v841 = vpop.f32.mrb[0].mxu0
        %v842 = vadd.f32 %v338, %v841
        %843 = vmatprep.mubr.bf16.mxu0 %v468
        %844 = vmatmul.mubr.bf16.gmra.mrb[0].mxu0 %v467
        %v845 = vpop.f32.mrb[0].mxu0
        %v846 = vadd.f32 %v334, %v845
        %v847 = vpop.f32.mrb[0].mxu0
        %v848 = vadd.f32 %v338, %v847
        %v849 = vpop.f32.mrb[0].mxu0
        %v850 = vadd.f32 %v334, %v849
        %v851 = vpop.f32.mrb[0].mxu0
        %v852 = vadd.f32 %v338, %v851
        %853 = vdwg.mxu0
        %v854 = vtanh.pop %v696
        %v855 = vtanh.pop %v700
        %v856 = vtanh.pop %v706
        %v857 = vtanh.pop %v710
        %v858 = vtanh.pop %v716
        %v859 = vtanh.pop %v720
        %v860 = vtanh.pop %v726
        %v861 = vtanh.pop %v730
        %v862 = vtanh.pop %v736
        %v863 = vtanh.pop %v740
        %v864 = vtanh.pop %v746
        %v865 = vtanh.pop %v750
        %v866 = vtanh.pop %v756
        %v867 = vtanh.pop %v760
        %v868 = vtanh.pop %v766
        %v869 = vtanh.pop %v770
        %v870 = vtanh.pop %v776
        %v871 = vtanh.pop %v780
        %v872 = vtanh.pop %v786
        %v873 = vtanh.pop %v790
        %v874 = vtanh.pop %v796
        %v875 = vtanh.pop %v800
        %v876 = vtanh.pop %v806
        %v877 = vtanh.pop %v810
        %v878 = vtanh.pop %v816
        %v879 = vtanh.pop %v820
        %v880 = vtanh.pop %v826
        %v881 = vtanh.pop %v830
        %v882 = vtanh.pop %v836
        %v883 = vtanh.pop %v840
        %v884 = vtanh.pop %v846
        %v885 = vtanh.pop %v850
        %v886 = vxor.u32 %v698, 2147483648
        %v887 = vxor.u32 %v702, 2147483648
        %v888 = vxor.u32 %v708, 2147483648
        %v889 = vxor.u32 %v712, 2147483648
        %v890 = vxor.u32 %v718, 2147483648
        %v891 = vxor.u32 %v722, 2147483648
        %v892 = vxor.u32 %v728, 2147483648
        %v893 = vxor.u32 %v732, 2147483648
        %v894 = vxor.u32 %v738, 2147483648
        %v895 = vxor.u32 %v742, 2147483648
        %v896 = vxor.u32 %v748, 2147483648
        %v897 = vxor.u32 %v752, 2147483648
        %v898 = vxor.u32 %v758, 2147483648
        %v899 = vxor.u32 %v762, 2147483648
        %v900 = vxor.u32 %v768, 2147483648
        %v901 = vxor.u32 %v772, 2147483648
        %v902 = vxor.u32 %v778, 2147483648
        %v903 = vxor.u32 %v782, 2147483648
        %v904 = vxor.u32 %v788, 2147483648
        %v905 = vxor.u32 %v792, 2147483648
        %v906 = vxor.u32 %v798, 2147483648
        %v907 = vxor.u32 %v802, 2147483648
        %v908 = vxor.u32 %v808, 2147483648
        %v909 = vxor.u32 %v812, 2147483648
        %v910 = vxor.u32 %v818, 2147483648
        %v911 = vxor.u32 %v822, 2147483648
        %v912 = vxor.u32 %v828, 2147483648
        %v913 = vxor.u32 %v832, 2147483648
        %v914 = vxor.u32 %v838, 2147483648
        %v915 = vxor.u32 %v842, 2147483648
        %v916 = vxor.u32 %v848, 2147483648
        %v917 = vxor.u32 %v852, 2147483648
        %v918 = vmul.f32 %v886, 1.442695
        %v919 = vpow.pop %v918
        %v920 = vmul.f32 %v887, 1.442695
        %v921 = vpow.pop %v920
        %v922 = vmul.f32 %v888, 1.442695
        %v923 = vpow.pop %v922
        %v924 = vmul.f32 %v889, 1.442695
        %v925 = vpow.pop %v924
        %v926 = vmul.f32 %v890, 1.442695
        %v927 = vpow.pop %v926
        %v928 = vmul.f32 %v891, 1.442695
        %v929 = vpow.pop %v928
        %v930 = vmul.f32 %v892, 1.442695
        %v931 = vpow.pop %v930
        %v932 = vmul.f32 %v893, 1.442695
        %v933 = vpow.pop %v932
        %v934 = vmul.f32 %v894, 1.442695
        %v935 = vpow.pop %v934
        %v936 = vmul.f32 %v895, 1.442695
        %v937 = vpow.pop %v936
        %v938 = vmul.f32 %v896, 1.442695
        %v939 = vpow.pop %v938
        %v940 = vmul.f32 %v897, 1.442695
        %v941 = vpow.pop %v940
        %v942 = vmul.f32 %v898, 1.442695
        %v943 = vpow.pop %v942
        %v944 = vmul.f32 %v899, 1.442695
        %v945 = vpow.pop %v944
        %v946 = vmul.f32 %v900, 1.442695
        %v947 = vpow.pop %v946
        %v948 = vmul.f32 %v901, 1.442695
        %v949 = vpow.pop %v948
        %v950 = vmul.f32 %v902, 1.442695
        %v951 = vpow.pop %v950
        %v952 = vmul.f32 %v903, 1.442695
        %v953 = vpow.pop %v952
        %v954 = vmul.f32 %v904, 1.442695
        %v955 = vpow.pop %v954
        %v956 = vmul.f32 %v905, 1.442695
        %v957 = vpow.pop %v956
        %v958 = vmul.f32 %v906, 1.442695
        %v959 = vpow.pop %v958
        %v960 = vmul.f32 %v907, 1.442695
        %v961 = vpow.pop %v960
        %v962 = vmul.f32 %v908, 1.442695
        %v963 = vpow.pop %v962
        %v964 = vmul.f32 %v909, 1.442695
        %v965 = vpow.pop %v964
        %v966 = vmul.f32 %v910, 1.442695
        %v967 = vpow.pop %v966
        %v968 = vmul.f32 %v911, 1.442695
        %v969 = vpow.pop %v968
        %v970 = vmul.f32 %v912, 1.442695
        %v971 = vpow.pop %v970
        %v972 = vmul.f32 %v913, 1.442695
        %v973 = vpow.pop %v972
        %v974 = vmul.f32 %v914, 1.442695
        %v975 = vpow.pop %v974
        %v976 = vmul.f32 %v915, 1.442695
        %v977 = vpow.pop %v976
        %v978 = vmul.f32 %v916, 1.442695
        %v979 = vpow.pop %v978
        %v980 = vmul.f32 %v917, 1.442695
        %v981 = vpow.pop %v980
        %v982 = vadd.f32 %v919, 1.0
        %v983 = vadd.f32 %v921, 1.0
        %v984 = vadd.f32 %v923, 1.0
        %v985 = vadd.f32 %v925, 1.0
        %v986 = vadd.f32 %v927, 1.0
        %v987 = vadd.f32 %v929, 1.0
        %v988 = vadd.f32 %v931, 1.0
        %v989 = vadd.f32 %v933, 1.0
        %v990 = vadd.f32 %v935, 1.0
        %v991 = vadd.f32 %v937, 1.0
        %v992 = vadd.f32 %v939, 1.0
        %v993 = vadd.f32 %v941, 1.0
        %v994 = vadd.f32 %v943, 1.0
        %v995 = vadd.f32 %v945, 1.0
        %v996 = vadd.f32 %v947, 1.0
        %v997 = vadd.f32 %v949, 1.0
        %v998 = vadd.f32 %v951, 1.0
        %v999 = vadd.f32 %v953, 1.0
        %v1000 = vadd.f32 %v955, 1.0
        %v1001 = vadd.f32 %v957, 1.0
        %v1002 = vadd.f32 %v959, 1.0
        %v1003 = vadd.f32 %v961, 1.0
        %v1004 = vadd.f32 %v963, 1.0
        %v1005 = vadd.f32 %v965, 1.0
        %v1006 = vadd.f32 %v967, 1.0
        %v1007 = vadd.f32 %v969, 1.0
        %v1008 = vadd.f32 %v971, 1.0
        %v1009 = vadd.f32 %v973, 1.0
        %v1010 = vadd.f32 %v975, 1.0
        %v1011 = vadd.f32 %v977, 1.0
        %v1012 = vadd.f32 %v979, 1.0
        %v1013 = vadd.f32 %v981, 1.0
        %v1014 = vrcp.pop %v982
        %v1015 = vmul.f32 1.0, %v1014
        %v1016 = vrcp.pop %v983
        %v1017 = vmul.f32 1.0, %v1016
        %v1018 = vrcp.pop %v984
        %v1019 = vmul.f32 1.0, %v1018
        %v1020 = vrcp.pop %v985
        %v1021 = vmul.f32 1.0, %v1020
        %v1022 = vrcp.pop %v986
        %v1023 = vmul.f32 1.0, %v1022
        %v1024 = vrcp.pop %v987
        %v1025 = vmul.f32 1.0, %v1024
        %v1026 = vrcp.pop %v988
        %v1027 = vmul.f32 1.0, %v1026
        %v1028 = vrcp.pop %v989
        %v1029 = vmul.f32 1.0, %v1028
        %v1030 = vrcp.pop %v990
        %v1031 = vmul.f32 1.0, %v1030
        %v1032 = vrcp.pop %v991
        %v1033 = vmul.f32 1.0, %v1032
        %v1034 = vrcp.pop %v992
        %v1035 = vmul.f32 1.0, %v1034
        %v1036 = vrcp.pop %v993
        %v1037 = vmul.f32 1.0, %v1036
        %v1038 = vrcp.pop %v994
        %v1039 = vmul.f32 1.0, %v1038
        %v1040 = vrcp.pop %v995
        %v1041 = vmul.f32 1.0, %v1040
        %v1042 = vrcp.pop %v996
        %v1043 = vmul.f32 1.0, %v1042
        %v1044 = vrcp.pop %v997
        %v1045 = vmul.f32 1.0, %v1044
        %v1046 = vrcp.pop %v998
        %v1047 = vmul.f32 1.0, %v1046
        %v1048 = vrcp.pop %v999
        %v1049 = vmul.f32 1.0, %v1048
        %v1050 = vrcp.pop %v1000
        %v1051 = vmul.f32 1.0, %v1050
        %v1052 = vrcp.pop %v1001
        %v1053 = vmul.f32 1.0, %v1052
        %v1054 = vrcp.pop %v1002
        %v1055 = vmul.f32 1.0, %v1054
        %v1056 = vrcp.pop %v1003
        %v1057 = vmul.f32 1.0, %v1056
        %v1058 = vrcp.pop %v1004
        %v1059 = vmul.f32 1.0, %v1058
        %v1060 = vrcp.pop %v1005
        %v1061 = vmul.f32 1.0, %v1060
        %v1062 = vrcp.pop %v1006
        %v1063 = vmul.f32 1.0, %v1062
        %v1064 = vrcp.pop %v1007
        %v1065 = vmul.f32 1.0, %v1064
        %v1066 = vrcp.pop %v1008
        %v1067 = vmul.f32 1.0, %v1066
        %v1068 = vrcp.pop %v1009
        %v1069 = vmul.f32 1.0, %v1068
        %v1070 = vrcp.pop %v1010
        %v1071 = vmul.f32 1.0, %v1070
        %v1072 = vrcp.pop %v1011
        %v1073 = vmul.f32 1.0, %v1072
        %v1074 = vrcp.pop %v1012
        %v1075 = vmul.f32 1.0, %v1074
        %v1076 = vrcp.pop %v1013
        %v1077 = vmul.f32 1.0, %v1076
        %v1078 = vmul.f32 %v854, %v1015
        %v1079 = vmul.f32 %v855, %v1017
        %v1080 = vmul.f32 %v856, %v1019
        %v1081 = vmul.f32 %v857, %v1021
        %v1082 = vmul.f32 %v858, %v1023
        %v1083 = vmul.f32 %v859, %v1025
        %v1084 = vmul.f32 %v860, %v1027
        %v1085 = vmul.f32 %v861, %v1029
        %v1086 = vmul.f32 %v862, %v1031
        %v1087 = vmul.f32 %v863, %v1033
        %v1088 = vmul.f32 %v864, %v1035
        %v1089 = vmul.f32 %v865, %v1037
        %v1090 = vmul.f32 %v866, %v1039
        %v1091 = vmul.f32 %v867, %v1041
        %v1092 = vmul.f32 %v868, %v1043
        %v1093 = vmul.f32 %v869, %v1045
        %v1094 = vmul.f32 %v870, %v1047
        %v1095 = vmul.f32 %v871, %v1049
        %v1096 = vmul.f32 %v872, %v1051
        %v1097 = vmul.f32 %v873, %v1053
        %v1098 = vmul.f32 %v874, %v1055
        %v1099 = vmul.f32 %v875, %v1057
        %v1100 = vmul.f32 %v876, %v1059
        %v1101 = vmul.f32 %v877, %v1061
        %v1102 = vmul.f32 %v878, %v1063
        %v1103 = vmul.f32 %v879, %v1065
        %v1104 = vmul.f32 %v880, %v1067
        %v1105 = vmul.f32 %v881, %v1069
        %v1106 = vmul.f32 %v882, %v1071
        %v1107 = vmul.f32 %v883, %v1073
        %v1108 = vmul.f32 %v884, %v1075
        %v1109 = vmul.f32 %v885, %v1077
        %v1110 = vld [vmem:[%s3] sm:$0x1]
        %v1112 = vlaneseq
        %v1113 = vshrl.u32 %v1112, 7
        %v1114 = vsub.s32 0, %v1113
        %v1115 = vrot.slane %v1110, %v1114
        %v1117 = vmul.f32 %v1078, %v1115
        %v1118 = vmul.f32 %v1079, %v1115
        %v1119 = vmul.f32 %v1080, %v1115
        %v1120 = vmul.f32 %v1081, %v1115
        %v1121 = vmul.f32 %v1082, %v1115
        %v1122 = vmul.f32 %v1083, %v1115
        %v1123 = vmul.f32 %v1084, %v1115
        %v1124 = vmul.f32 %v1085, %v1115
        %v1125 = vmul.f32 %v1086, %v1115
        %v1126 = vmul.f32 %v1087, %v1115
        %v1127 = vmul.f32 %v1088, %v1115
        %v1128 = vmul.f32 %v1089, %v1115
        %v1129 = vmul.f32 %v1090, %v1115
        %v1130 = vmul.f32 %v1091, %v1115
        %v1131 = vmul.f32 %v1092, %v1115
        %v1132 = vmul.f32 %v1093, %v1115
        %v1133 = vmul.f32 %v1094, %v1115
        %v1134 = vmul.f32 %v1095, %v1115
        %v1135 = vmul.f32 %v1096, %v1115
        %v1136 = vmul.f32 %v1097, %v1115
        %v1137 = vmul.f32 %v1098, %v1115
        %v1138 = vmul.f32 %v1099, %v1115
        %v1139 = vmul.f32 %v1100, %v1115
        %v1140 = vmul.f32 %v1101, %v1115
        %v1141 = vmul.f32 %v1102, %v1115
        %v1142 = vmul.f32 %v1103, %v1115
        %v1143 = vmul.f32 %v1104, %v1115
        %v1144 = vmul.f32 %v1105, %v1115
        %v1145 = vmul.f32 %v1106, %v1115
        %v1146 = vmul.f32 %v1107, %v1115
        %v1147 = vmul.f32 %v1108, %v1115
        %v1148 = vmul.f32 %v1109, %v1115
        %1149 = vadd.xlane.f32.xlu0 %v1117
        %v1150 = vpop.xlane.xlu0 %1149
        %1151 = vadd.xlane.f32.xlu0 %v1118
        %v1152 = vpop.xlane.xlu0 %1151
        %1153 = vadd.xlane.f32.xlu0 %v1119
        %v1154 = vpop.xlane.xlu0 %1153
        %1155 = vadd.xlane.f32.xlu0 %v1120
        %v1156 = vpop.xlane.xlu0 %1155
        %1157 = vadd.xlane.f32.xlu0 %v1121
        %v1158 = vpop.xlane.xlu0 %1157
        %1159 = vadd.xlane.f32.xlu0 %v1122
        %v1160 = vpop.xlane.xlu0 %1159
        %1161 = vadd.xlane.f32.xlu0 %v1123
        %v1162 = vpop.xlane.xlu0 %1161
        %1163 = vadd.xlane.f32.xlu0 %v1124
        %v1164 = vpop.xlane.xlu0 %1163
        %1165 = vadd.xlane.f32.xlu0 %v1125
        %v1166 = vpop.xlane.xlu0 %1165
        %1167 = vadd.xlane.f32.xlu0 %v1126
        %v1168 = vpop.xlane.xlu0 %1167
        %1169 = vadd.xlane.f32.xlu0 %v1127
        %v1170 = vpop.xlane.xlu0 %1169
        %1171 = vadd.xlane.f32.xlu0 %v1128
        %v1172 = vpop.xlane.xlu0 %1171
        %1173 = vadd.xlane.f32.xlu0 %v1129
        %v1174 = vpop.xlane.xlu0 %1173
        %1175 = vadd.xlane.f32.xlu0 %v1130
        %v1176 = vpop.xlane.xlu0 %1175
        %1177 = vadd.xlane.f32.xlu0 %v1131
        %v1178 = vpop.xlane.xlu0 %1177
        %1179 = vadd.xlane.f32.xlu0 %v1132
        %v1180 = vpop.xlane.xlu0 %1179
        %1181 = vadd.xlane.f32.xlu0 %v1133
        %v1182 = vpop.xlane.xlu0 %1181
        %1183 = vadd.xlane.f32.xlu0 %v1134
        %v1184 = vpop.xlane.xlu0 %1183
        %1185 = vadd.xlane.f32.xlu0 %v1135
        %v1186 = vpop.xlane.xlu0 %1185
        %1187 = vadd.xlane.f32.xlu0 %v1136
        %v1188 = vpop.xlane.xlu0 %1187
        %1189 = vadd.xlane.f32.xlu0 %v1137
        %v1190 = vpop.xlane.xlu0 %1189
        %1191 = vadd.xlane.f32.xlu0 %v1138
        %v1192 = vpop.xlane.xlu0 %1191
        %1193 = vadd.xlane.f32.xlu0 %v1139
        %v1194 = vpop.xlane.xlu0 %1193
        %1195 = vadd.xlane.f32.xlu0 %v1140
        %v1196 = vpop.xlane.xlu0 %1195
        %1197 = vadd.xlane.f32.xlu0 %v1141
        %v1198 = vpop.xlane.xlu0 %1197
        %1199 = vadd.xlane.f32.xlu0 %v1142
        %v1200 = vpop.xlane.xlu0 %1199
        %1201 = vadd.xlane.f32.xlu0 %v1143
        %v1202 = vpop.xlane.xlu0 %1201
        %1203 = vadd.xlane.f32.xlu0 %v1144
        %v1204 = vpop.xlane.xlu0 %1203
        %1205 = vadd.xlane.f32.xlu0 %v1145
        %v1206 = vpop.xlane.xlu0 %1205
        %1207 = vadd.xlane.f32.xlu0 %v1146
        %v1208 = vpop.xlane.xlu0 %1207
        %1209 = vadd.xlane.f32.xlu0 %v1147
        %v1210 = vpop.xlane.xlu0 %1209
        %1211 = vadd.xlane.f32.xlu0 %v1148
        %v1212 = vpop.xlane.xlu0 %1211
        %v1213 = vld [vmem:[#allocation2] sm:$0x1]
        %v1215 = vlaneseq
        %v1216 = vshrl.u32 %v1215, 7
        %v1217 = vsub.s32 0, %v1216
        %v1218 = vrot.slane %v1213, %v1217
        %v1220 = vadd.f32 %v1150, %v1218
        %v1221 = vadd.f32 %v1152, %v1218
        %v1222 = vadd.f32 %v1154, %v1218
        %v1223 = vadd.f32 %v1156, %v1218
        %v1224 = vadd.f32 %v1158, %v1218
        %v1225 = vadd.f32 %v1160, %v1218
        %v1226 = vadd.f32 %v1162, %v1218
        %v1227 = vadd.f32 %v1164, %v1218
        %v1228 = vadd.f32 %v1166, %v1218
        %v1229 = vadd.f32 %v1168, %v1218
        %v1230 = vadd.f32 %v1170, %v1218
        %v1231 = vadd.f32 %v1172, %v1218
        %v1232 = vadd.f32 %v1174, %v1218
        %v1233 = vadd.f32 %v1176, %v1218
        %v1234 = vadd.f32 %v1178, %v1218
        %v1235 = vadd.f32 %v1180, %v1218
        %v1236 = vadd.f32 %v1182, %v1218
        %v1237 = vadd.f32 %v1184, %v1218
        %v1238 = vadd.f32 %v1186, %v1218
        %v1239 = vadd.f32 %v1188, %v1218
        %v1240 = vadd.f32 %v1190, %v1218
        %v1241 = vadd.f32 %v1192, %v1218
        %v1242 = vadd.f32 %v1194, %v1218
        %v1243 = vadd.f32 %v1196, %v1218
        %v1244 = vadd.f32 %v1198, %v1218
        %v1245 = vadd.f32 %v1200, %v1218
        %v1246 = vadd.f32 %v1202, %v1218
        %v1247 = vadd.f32 %v1204, %v1218
        %v1248 = vadd.f32 %v1206, %v1218
        %v1249 = vadd.f32 %v1208, %v1218
        %v1250 = vadd.f32 %v1210, %v1218
        %v1251 = vadd.f32 %v1212, %v1218
        %vm1252 = vcmask 7168
        %1253 = vst.msk [vmem:[%s263] sm:$0xff] %vm1252, %v1220
        %1254 = vst.msk [vmem:[%s263 + $0x8] sm:$0xff] %vm1252, %v1221
        %1255 = vst.msk [vmem:[%s263 + $0x10] sm:$0xff] %vm1252, %v1222
        %1256 = vst.msk [vmem:[%s263 + $0x18] sm:$0xff] %vm1252, %v1223
        %1257 = vst.msk [vmem:[%s263 + $0x20] sm:$0xff] %vm1252, %v1224
        %1258 = vst.msk [vmem:[%s263 + $0x28] sm:$0xff] %vm1252, %v1225
        %1259 = vst.msk [vmem:[%s263 + $0x30] sm:$0xff] %vm1252, %v1226
        %1260 = vst.msk [vmem:[%s263 + $0x38] sm:$0xff] %vm1252, %v1227
        %1261 = vst.msk [vmem:[%s263 + $0x40] sm:$0xff] %vm1252, %v1228
        %1262 = vst.msk [vmem:[%s263 + $0x48] sm:$0xff] %vm1252, %v1229
        %1263 = vst.msk [vmem:[%s263 + $0x50] sm:$0xff] %vm1252, %v1230
        %1264 = vst.msk [vmem:[%s263 + $0x58] sm:$0xff] %vm1252, %v1231
        %1265 = vst.msk [vmem:[%s263 + $0x60] sm:$0xff] %vm1252, %v1232
        %1266 = vst.msk [vmem:[%s263 + $0x68] sm:$0xff] %vm1252, %v1233
        %1267 = vst.msk [vmem:[%s263 + $0x70] sm:$0xff] %vm1252, %v1234
        %1268 = vst.msk [vmem:[%s263 + $0x78] sm:$0xff] %vm1252, %v1235
        %1269 = vst.msk [vmem:[%s263 + $0x80] sm:$0xff] %vm1252, %v1236
        %1270 = vst.msk [vmem:[%s263 + $0x88] sm:$0xff] %vm1252, %v1237
        %1271 = vst.msk [vmem:[%s263 + $0x90] sm:$0xff] %vm1252, %v1238
        %1272 = vst.msk [vmem:[%s263 + $0x98] sm:$0xff] %vm1252, %v1239
        %1273 = vst.msk [vmem:[%s263 + $0xa0] sm:$0xff] %vm1252, %v1240
        %1274 = vst.msk [vmem:[%s263 + $0xa8] sm:$0xff] %vm1252, %v1241
        %1275 = vst.msk [vmem:[%s263 + $0xb0] sm:$0xff] %vm1252, %v1242
        %1276 = vst.msk [vmem:[%s263 + $0xb8] sm:$0xff] %vm1252, %v1243
        %1277 = vst.msk [vmem:[%s263 + $0xc0] sm:$0xff] %vm1252, %v1244
        %1278 = vst.msk [vmem:[%s263 + $0xc8] sm:$0xff] %vm1252, %v1245
        %1279 = vst.msk [vmem:[%s263 + $0xd0] sm:$0xff] %vm1252, %v1246
        %1280 = vst.msk [vmem:[%s263 + $0xd8] sm:$0xff] %vm1252, %v1247
        %1281 = vst.msk [vmem:[%s263 + $0xe0] sm:$0xff] %vm1252, %v1248
        %1282 = vst.msk [vmem:[%s263 + $0xe8] sm:$0xff] %vm1252, %v1249
        %1283 = vst.msk [vmem:[%s263 + $0xf0] sm:$0xff] %vm1252, %v1250
        %1284 = vst.msk [vmem:[%s263 + $0xf8] sm:$0xff] %vm1252, %v1251
        %s1285 = smul.u32 32, %s22
        %p1286 = scmp.lt.s32.totalorder %s1285, 63
        %s1287 = scalar_select %p1286, %s1285, 63
        %s1288 = smul.addr %s1287, 8
        %s1289 = scalar_lea.vmem %s5, %s1288
        // Predicated region
        $region49: #{tpu_custom_call.1} parent=39 // pred_check
          %p1290 = pneg %p150
        $region50: #{tpu_custom_call.1} parent=39 // pred_check_branch
          %1292 = sbr.rel (%p1290) target = $region52
        $region51: #{tpu_custom_call.1} parent=39 // pred_region
          %s1293 = smul.u32 32, %s22
        $region52: #{tpu_custom_call.1} parent=39 // pred_fallthru
          _
      $region40: #{tpu_custom_call.1} parent=5 // pred_fallthru
        _
      %p1294 = scmp.le.s32.totalorder 2, %s17
      // Predicated region
      $region53: #{tpu_custom_call.1} parent=5 // pred_check
        %p1295 = pneg %p1294
      $region54: #{tpu_custom_call.1} parent=5 // pred_check_branch
        %1297 = sbr.rel (%p1295) target = $region56
      $region55: #{tpu_custom_call.1} parent=5 // pred_region
        %s1298 = ssub.s32 %s17, 2
        // Predicated region
        $region57: #{tpu_custom_call.1} parent=55 // pred_check
          %p1299 = pneg %p156
        $region58: #{tpu_custom_call.1} parent=55 // pred_check_branch
          %1301 = sbr.rel (%p1299) target = $region60
        $region59: #{tpu_custom_call.1} parent=55 // pred_region
          %s1302 = smul.u32 32, %s23
          %p1303 = scmp.lt.s32.totalorder %s1302, 63
          %s1304 = scalar_select %p1303, %s1302, 63
          %s1305 = smul.addr %s1304, 8
          %s1306 = scalar_lea.vmem %s5, %s1305
        $region60: #{tpu_custom_call.1} parent=55 // pred_fallthru
          _
      $region56: #{tpu_custom_call.1} parent=5 // pred_fallthru
        _
    $region6: #{tpu_custom_call.1} parent=1 // loop_footer
      %s21 = sadd.s32 1, %s17
    $region7: #{tpu_custom_call.1} parent=1 // loop_footer_branch
      %16 = sbr.rel target = $region3
    $region8: #{tpu_custom_call.1} parent=1 // loop_exit
      _
    %1307 = vsyncpa [#allocation4], 1
    %s1308 = scalar_lea.sflag [#allocation4], 1
    %1309 = vsyncpa %s1308, 1
    %1310 = vsyncpa [#allocation6], 1

</llo_original>
